<compile_context>
chip_gen: v6e
topology: v6e:2x2x1
jax: 0.10.0
libtpu: 0.0.40
codegen_flags: <defaults>
</compile_context>

<pallas_src>
import functools

import jax
import jax.numpy as jnp
import numpy as np
from jax.experimental import pallas as pl
from jax.experimental.pallas import tpu as pltpu


def _round_up(x, m):
    return ((x + m - 1) // m) * m


def _decdiffk_kernel(mid_ref, x_ref, w_ref, o_ref, *, n_modals):
    """Computes one (TM, TN) output tile.

    mid_ref: (TM, 1) int32          per-row modal id (static table)
    x_ref:   (TM, D) compute dtype  activations
    w_ref:   (n_modals, D, TN)      per-modal weight slabs (VMEM-resident)
    o_ref:   (TM, TN)               output tile (TN % 128 == 0 -> unmasked vst)
    """
    x = x_ref[...]
    mid = mid_ref[...]                                  # (TM, 1)
    acc = jnp.zeros(o_ref.shape, jnp.float32)
    for m in range(n_modals):                           # static unroll
        mask = mid == m                                 # (TM, 1), lane-broadcast
        xm = jnp.where(mask, x, jnp.zeros_like(x))
        acc = acc + jnp.dot(xm, w_ref[m], preferred_element_type=jnp.float32)
    o_ref[...] = acc.astype(o_ref.dtype)


def prepare_weights(w_stacked, compute_dtype=jnp.bfloat16):
    """One-time weight prep (hoisted out of the per-call path).

    w_stacked: (n_modals, d_model, n_head*d_k) with y = x @ w_stacked[i]
               (i.e. already transposed vs. torch's (out, in) Linear weight).
    Returns (n_modals, d_model, HDk_pad) in compute_dtype, lane-padded to 128.
    """
    n_modals, d_model, hdk = w_stacked.shape
    hdk_pad = _round_up(hdk, 128)
    w = jnp.asarray(w_stacked, dtype=compute_dtype)
    if hdk_pad != hdk:
        w = jnp.pad(w, ((0, 0), (0, 0), (0, hdk_pad - hdk)))
    return w


def dec_diff_k(guider_rep, w_prepared, modals_num_list, n_head, d_k,
               *, compute_dtype=jnp.bfloat16):
    """Pallas implementation of DecDiffK.forward.

    guider_rep: (B, L, d_model)
    w_prepared: (n_modals, d_model, HDk_pad) from prepare_weights()
    modals_num_list: static python list of ints summing to L
    returns: (B, L, n_head, d_k) in guider_rep.dtype
    """
    B, L, D = guider_rep.shape
    n_modals, Dw, HDk_pad = w_prepared.shape
    HDk = n_head * d_k
    assert Dw == D
    assert sum(modals_num_list) == L
    assert len(modals_num_list) == n_modals
    assert HDk <= HDk_pad and HDk_pad % 128 == 0

    M = B * L
    out_dtype = guider_rep.dtype

    # --- row tile: <= 512 rows, >= 2 grid steps along M whenever possible.
    if M <= 512:
        TM = max(8, _round_up((M + 1) // 2, 8))
        if TM >= M:
            TM = _round_up(M, 8)
    else:
        TM = 512
    Mt = pl.cdiv(M, TM)

    # --- N tile over the (padded) head*d_k dim: lane-dense, VMEM-friendly.
    TN = HDk_pad if HDk_pad <= 512 else 512
    Nt = pl.cdiv(HDk_pad, TN)

    # --- static per-row modal-id table (compile-time constant, no XLA work).
    mid_np = np.concatenate(
        [np.full(int(n), m, dtype=np.int32) for m, n in enumerate(modals_num_list)])
    modal_ids = jnp.asarray(np.tile(mid_np, B).reshape(M, 1))

    # --- activations: flatten and cast to the MXU-native compute dtype.
    x2d = guider_rep.reshape(M, D).astype(compute_dtype)

    in_isz = jnp.dtype(compute_dtype).itemsize
    out_isz = jnp.dtype(out_dtype).itemsize

    # VMEM budget: double-buffered x/out/ids blocks + (double-buffered) weight slab.
    vmem_need = (2 * TM * D * in_isz
                 + 2 * n_modals * D * TN * in_isz
                 + 2 * TM * TN * out_isz
                 + 2 * TM * 128 * 4)
    vmem_limit = int(min(max(2 * vmem_need + (2 << 20), 32 << 20), 64 << 20))

    flops = 2 * M * D * HDk_pad * n_modals
    bytes_accessed = (M * D * in_isz
                      + n_modals * D * HDk_pad * in_isz
                      + M * HDk_pad * out_isz
                      + M * 4)

    kernel = functools.partial(_decdiffk_kernel, n_modals=n_modals)

    out = pl.pallas_call(
        kernel,
        out_shape=jax.ShapeDtypeStruct((M, HDk_pad), out_dtype),
        grid_spec=pltpu.PrefetchScalarGridSpec(
            num_scalar_prefetch=0,
            # N outer / M inner: the weight slab for a given j is DMA'd once
            # and stays resident across all M tiles.
            grid=(Nt, Mt),
            in_specs=[
                pl.BlockSpec((TM, 1), lambda j, i: (i, 0)),            # modal ids
                pl.BlockSpec((TM, D), lambda j, i: (i, 0)),            # activations
                pl.BlockSpec((n_modals, D, TN), lambda j, i: (0, 0, j)),  # weights
            ],
            out_specs=pl.BlockSpec((TM, TN), lambda j, i: (i, j)),
        ),
        compiler_params=pltpu.CompilerParams(
            dimension_semantics=("parallel", "parallel"),
            vmem_limit_bytes=vmem_limit,
        ),
        cost_estimate=pl.CostEstimate(
            flops=flops, transcendentals=0, bytes_accessed=bytes_accessed),
    )(modal_ids, x2d, w_prepared)

    if HDk_pad != HDk:
        out = out[:, :HDk]
    return out.reshape(B, L, n_head, d_k)


def dec_diff_k_reference(guider_rep, w_stacked, modals_num_list, n_head, d_k,
                         *, compute_dtype=jnp.bfloat16):
    """Pure-JAX reference mirroring the PyTorch forward (operands quantized to
    the kernel's compute dtype so the comparison isolates logic, not bf16)."""
    B, L, _ = guider_rep.shape
    outs = []
    off = 0
    for i, n in enumerate(modals_num_list):
        seg = guider_rep[:, off:off + n, :].astype(compute_dtype).astype(jnp.float32)
        w = w_stacked[i].astype(compute_dtype).astype(jnp.float32)
        outs.append(jnp.einsum("bld,dk->blk", seg, w,
                               precision=jax.lax.Precision.HIGHEST))
        off += n
    guider_k = jnp.concatenate(outs, axis=1)
    return guider_k.reshape(B, L, n_head, d_k).astype(guider_rep.dtype)


if __name__ == "__main__":
    # Small shapes consistent with the module.
    n_head, d_model, d_k, n_modals = 4, 32, 8, 3
    modals_num_list = [3, 5, 8]               # sums to L = 16
    B = 2
    L = sum(modals_num_list)

    key = jax.random.PRNGKey(0)
    k_x, k_w = jax.random.split(key)
    guider_rep = jax.random.normal(k_x, (B, L, d_model), dtype=jnp.float32)
    # Stacked per-modal Linear weights, stored as (n_modals, d_model,
    # n_head*d_k) so y = x @ W (== x @ torchW.T).
    w_stacked = 0.02 * jax.random.normal(
        k_w, (n_modals, d_model, n_head * d_k), dtype=jnp.float32)

    # One-time weight prep (pad to lane multiple, cast to bf16) -- outside jit.
    w_prepared = prepare_weights(w_stacked)

    run = jax.jit(functools.partial(
        dec_diff_k,
        modals_num_list=modals_num_list, n_head=n_head, d_k=d_k))
    out = jax.block_until_ready(run(guider_rep, w_prepared))

    ref = dec_diff_k_reference(guider_rep, w_stacked, modals_num_list,
                               n_head, d_k)
    assert out.shape == (B, L, n_head, d_k), out.shape
    np.testing.assert_allclose(np.asarray(out, dtype=np.float32),
                               np.asarray(ref, dtype=np.float32),
                               rtol=1e-3, atol=1e-3)
    print("KERNEL_OK")
</pallas_src>

<mosaic_0001>
module attributes {stable_mosaic.version = 11 : i64} {
  func.func @_decdiffk_kernel(%arg0: i32, %arg1: i32, %arg2: memref<16x1xi32, #tpu.memory_space<vmem>>, %arg3: memref<16x32xbf16, #tpu.memory_space<vmem>>, %arg4: memref<3x32x128xbf16, #tpu.memory_space<vmem>>, %arg5: memref<16x128xf32, #tpu.memory_space<vmem>>) attributes {dimension_semantics = [#tpu.dimension_semantics<parallel>, #tpu.dimension_semantics<parallel>], iteration_bounds = array<i64: 1, 2>, scalar_prefetch = 0 : i64, scratch_operands = 0 : i64, tpu.core_type = #tpu.core_type<tc>, window_params = [{transform_indices = @transform_0, window_bounds = array<i64: 16, 1>}, {transform_indices = @transform_1, window_bounds = array<i64: 16, 32>}, {transform_indices = @transform_2, window_bounds = array<i64: 3, 32, 128>}, {transform_indices = @transform_3, window_bounds = array<i64: 16, 128>}]} {
    %c0 = arith.constant 0 : index
    %c0_0 = arith.constant 0 : index
    %0 = vector.load %arg3[%c0, %c0_0] : memref<16x32xbf16, #tpu.memory_space<vmem>>, vector<16x32xbf16>
    %c0_1 = arith.constant 0 : index
    %c0_2 = arith.constant 0 : index
    %1 = vector.load %arg2[%c0_1, %c0_2] : memref<16x1xi32, #tpu.memory_space<vmem>>, vector<16x1xi32>
    %cst = arith.constant 0.000000e+00 : f32
    %2 = vector.broadcast %cst : f32 to vector<16x128xf32>
    %c0_i32 = arith.constant 0 : i32
    %3 = vector.broadcast %c0_i32 : i32 to vector<16x1xi32>
    %4 = arith.cmpi eq, %1, %3 : vector<16x1xi32>
    %cst_3 = arith.constant 0.000000e+00 : bf16
    %5 = vector.broadcast %cst_3 : bf16 to vector<16x32xbf16>
    %6 = vector.shape_cast %4 : vector<16x1xi1> to vector<16x1xi1>
    %7 = vector.broadcast %6 : vector<16x1xi1> to vector<16x32xi1>
    %8 = arith.select %7, %0, %5 : vector<16x32xi1>, vector<16x32xbf16>
    %c0_4 = arith.constant 0 : index
    %c0_5 = arith.constant 0 : index
    %c0_6 = arith.constant 0 : index
    %9 = vector.load %arg4[%c0_4, %c0_5, %c0_6] : memref<3x32x128xbf16, #tpu.memory_space<vmem>>, vector<1x32x128xbf16>
    %10 = vector.shape_cast %9 : vector<1x32x128xbf16> to vector<32x128xbf16>
    %cst_7 = arith.constant dense<0.000000e+00> : vector<16x128xf32>
    %11 = tpu.matmul %8, %10, %cst_7 {dimension_numbers = #tpu.dot_dimension_numbers<[1], [0], [0], [1], [0, 0, 1, 1], [], []>} : vector<16x32xbf16>, vector<32x128xbf16>, vector<16x128xf32> -> vector<16x128xf32>
    %12 = arith.addf %2, %11 : vector<16x128xf32>
    %c1_i32 = arith.constant 1 : i32
    %13 = vector.broadcast %c1_i32 : i32 to vector<16x1xi32>
    %14 = arith.cmpi eq, %1, %13 : vector<16x1xi32>
    %cst_8 = arith.constant 0.000000e+00 : bf16
    %15 = vector.broadcast %cst_8 : bf16 to vector<16x32xbf16>
    %16 = vector.shape_cast %14 : vector<16x1xi1> to vector<16x1xi1>
    %17 = vector.broadcast %16 : vector<16x1xi1> to vector<16x32xi1>
    %18 = arith.select %17, %0, %15 : vector<16x32xi1>, vector<16x32xbf16>
    %c1 = arith.constant 1 : index
    %c0_9 = arith.constant 0 : index
    %c0_10 = arith.constant 0 : index
    %19 = vector.load %arg4[%c1, %c0_9, %c0_10] : memref<3x32x128xbf16, #tpu.memory_space<vmem>>, vector<1x32x128xbf16>
    %20 = vector.shape_cast %19 : vector<1x32x128xbf16> to vector<32x128xbf16>
    %cst_11 = arith.constant dense<0.000000e+00> : vector<16x128xf32>
    %21 = tpu.matmul %18, %20, %cst_11 {dimension_numbers = #tpu.dot_dimension_numbers<[1], [0], [0], [1], [0, 0, 1, 1], [], []>} : vector<16x32xbf16>, vector<32x128xbf16>, vector<16x128xf32> -> vector<16x128xf32>
    %22 = arith.addf %12, %21 : vector<16x128xf32>
    %c2_i32 = arith.constant 2 : i32
    %23 = vector.broadcast %c2_i32 : i32 to vector<16x1xi32>
    %24 = arith.cmpi eq, %1, %23 : vector<16x1xi32>
    %cst_12 = arith.constant 0.000000e+00 : bf16
    %25 = vector.broadcast %cst_12 : bf16 to vector<16x32xbf16>
    %26 = vector.shape_cast %24 : vector<16x1xi1> to vector<16x1xi1>
    %27 = vector.broadcast %26 : vector<16x1xi1> to vector<16x32xi1>
    %28 = arith.select %27, %0, %25 : vector<16x32xi1>, vector<16x32xbf16>
    %c2 = arith.constant 2 : index
    %c0_13 = arith.constant 0 : index
    %c0_14 = arith.constant 0 : index
    %29 = vector.load %arg4[%c2, %c0_13, %c0_14] : memref<3x32x128xbf16, #tpu.memory_space<vmem>>, vector<1x32x128xbf16>
    %30 = vector.shape_cast %29 : vector<1x32x128xbf16> to vector<32x128xbf16>
    %cst_15 = arith.constant dense<0.000000e+00> : vector<16x128xf32>
    %31 = tpu.matmul %28, %30, %cst_15 {dimension_numbers = #tpu.dot_dimension_numbers<[1], [0], [0], [1], [0, 0, 1, 1], [], []>} : vector<16x32xbf16>, vector<32x128xbf16>, vector<16x128xf32> -> vector<16x128xf32>
    %32 = arith.addf %22, %31 : vector<16x128xf32>
    %c0_16 = arith.constant 0 : index
    %c0_17 = arith.constant 0 : index
    %33 = vector.load %arg5[%c0_16, %c0_17] : memref<16x128xf32, #tpu.memory_space<vmem>>, vector<16x128xf32>
    tpu.vector_store %arg5[%c0_16, %c0_17], %32 {strides = array<i32>} : memref<16x128xf32, #tpu.memory_space<vmem>>, vector<16x128xf32>,
    return
  }
  func.func @transform_0(%arg0: i32, %arg1: i32) -> (i32, i32) {
    %c0_i32 = arith.constant 0 : i32
    %c0_i32_0 = arith.constant 0 : i32
    return %arg1, %c0_i32 : i32, i32
  }
  func.func @transform_1(%arg0: i32, %arg1: i32) -> (i32, i32) {
    %c0_i32 = arith.constant 0 : i32
    %c0_i32_0 = arith.constant 0 : i32
    return %arg1, %c0_i32 : i32, i32
  }
  func.func @transform_2(%arg0: i32, %arg1: i32) -> (i32, i32, i32) {
    %c0_i32 = arith.constant 0 : i32
    %c0_i32_0 = arith.constant 0 : i32
    %c0_i32_1 = arith.constant 0 : i32
    return %c0_i32, %c0_i32_0, %arg0 : i32, i32, i32
  }
  func.func @transform_3(%arg0: i32, %arg1: i32) -> (i32, i32) {
    %c0_i32 = arith.constant 0 : i32
    return %arg1, %arg0 : i32, i32
  }
}

</mosaic_0001>

<llo_original>
// kernel: dec_diff_k.1
$region0: #{dec_diff_k.1}
  #allocation0 [shape = 'u32[]', space=smem, size = 0x4, offset = 0x4, fixed_abs, tag = 'smem constant byte address 0x4 - core index']
  #allocation1 [shape = 'u32[144,128]{1,0:T(1,128)}', space=vmem, size = 0x12000, scoped, tag = 'internal scratch']
  %s0 = inlined_call_operand.hbm [shape: s32[32,1], index: 0, kind: input, shape index: {}]
  %s1 = inlined_call_operand.vmem [shape: bf16[32,32], index: 1, kind: input, shape index: {}]
  %s2 = inlined_call_operand.vmem [shape: bf16[3,32,128], index: 2, kind: input, shape index: {}]
  %s3 = inlined_call_operand.vmem [shape: f32[32,128], index: 3, kind: output, shape index: {}]
  %s4 = sld [smem:[#allocation0]]
  $region49: #{dec_diff_k.1} parent=0
    _
  %s6 = ssub.s32 1, %s4
  %s7 = scalar_select 0, %s6, %s4
  $region1: #{dec_diff_k.1} parent=0
    #allocation2 [shape = 'u8[16384]{0}', space=vmem, size = 0x4000, scoped, tag = 'input window, operand 0']
    #allocation3 [shape = 's32[2]{0}', space=sflag, size = 0x8, scoped, tag = 'scoped memory for dec_diff_k.1']
    %8 = vsyncpa [#allocation3], 0
    %s9 = scalar_lea.sflag [#allocation3], 1
    %10 = vsyncpa %s9, 0
    loop: start=0, step=1, limit=4
    $region2: #{dec_diff_k.1} parent=1 // loop_pre_header
      _
    $region3: #{dec_diff_k.1} parent=1 // loop_header
      %s12 = sphi 0, %s16
      %p13 = scmp.ge.s32.totalorder %s12, 4
      %s19 = sphi 0, %s31
      %s20 = sphi 0, %s27
      %s21 = sphi 0, %s19
      %s22 = sphi 0, %s20
      %s23 = sphi 0, %s21
      %s24 = sphi 0, %s22
      %s34 = sphi 0, %s36
      %s37 = sphi 0, %s34
      %s38 = sphi 0, %s37
      %s54 = sphi 0, %s38
      %s60 = sphi 0, %s62
      %s63 = sphi 0, %s60
      %s64 = sphi 0, %s63
      %s80 = sphi 0, %s64
      %s86 = sphi 0, %s88
      %s89 = sphi 0, %s86
      %s90 = sphi 0, %s89
      %s106 = sphi 0, %s90
      %s114 = sphi 0, %s116
      %s117 = sphi 0, %s114
      %s118 = sphi 0, %s117
      %s134 = sphi 0, %s118
    $region4: #{dec_diff_k.1} parent=1 // loop_header_branch
      %15 = sbr.rel (%p13) target = $region8
    $region5: #{dec_diff_k.1} parent=1 // loop_body
      %s17 = ssub.s32 %s12, 1
      %s18 = ssub.s32 %s12, 2
      %s25 = sadd.s32 1, %s20
      %p26 = scmp.ge.s32.totalorder %s25, 2
      %s27 = scalar_select %p26, 0, %s25
      %s28 = sadd.s32 1, %s19
      %s29 = scalar_select %p26, %s28, %s19
      %p30 = scmp.ge.s32.totalorder %s29, 1
      %s31 = scalar_select %p30, 0, %s29
      %s32 = ssub.s32 %s20, %s27
      %p33 = scmp.eq.s32.totalorder %s32, 0
      %s35 = sadd.s32 %s34, 1
      %s36 = scalar_select %p33, %s34, %s35
      %p39 = pneg %p33
      %p40 = scmp.eq.s32.totalorder %s12, 1
      %p41 = por %p39, %p40
      %p42 = scmp.ne.s32.totalorder %s34, %s37
      %p43 = scmp.eq.s32.totalorder %s12, 0
      %p44 = por %p42, %p43
      %p45 = scmp.ne.s32.totalorder %s34, %s37
      %p46 = scmp.eq.s32.totalorder %s17, 1
      %p47 = por %p45, %p46
      %p48 = scmp.ne.s32.totalorder %s37, %s38
      %p49 = scmp.eq.s32.totalorder %s17, 0
      %p50 = por %p48, %p49
      %p51 = scmp.ne.s32.totalorder %s37, %s38
      %p52 = scmp.eq.s32.totalorder %s18, 1
      %p53 = por %p51, %p52
      %p55 = scmp.ne.s32.totalorder %s38, %s54
      %p56 = scmp.eq.s32.totalorder %s18, 0
      %p57 = por %p55, %p56
      %s58 = ssub.s32 %s20, %s27
      %p59 = scmp.eq.s32.totalorder %s58, 0
      %s61 = sadd.s32 %s60, 1
      %s62 = scalar_select %p59, %s60, %s61
      %p65 = pneg %p59
      %p66 = scmp.eq.s32.totalorder %s12, 1
      %p67 = por %p65, %p66
      %p68 = scmp.ne.s32.totalorder %s60, %s63
      %p69 = scmp.eq.s32.totalorder %s12, 0
      %p70 = por %p68, %p69
      %p71 = scmp.ne.s32.totalorder %s60, %s63
      %p72 = scmp.eq.s32.totalorder %s17, 1
      %p73 = por %p71, %p72
      %p74 = scmp.ne.s32.totalorder %s63, %s64
      %p75 = scmp.eq.s32.totalorder %s17, 0
      %p76 = por %p74, %p75
      %p77 = scmp.ne.s32.totalorder %s63, %s64
      %p78 = scmp.eq.s32.totalorder %s18, 1
      %p79 = por %p77, %p78
      %p81 = scmp.ne.s32.totalorder %s64, %s80
      %p82 = scmp.eq.s32.totalorder %s18, 0
      %p83 = por %p81, %p82
      %s84 = ssub.s32 %s19, %s31
      %p85 = scmp.eq.s32.totalorder %s84, 0
      %s87 = sadd.s32 %s86, 1
      %s88 = scalar_select %p85, %s86, %s87
      %p91 = pneg %p85
      %p92 = scmp.eq.s32.totalorder %s12, 1
      %p93 = por %p91, %p92
      %p94 = scmp.ne.s32.totalorder %s86, %s89
      %p95 = scmp.eq.s32.totalorder %s12, 0
      %p96 = por %p94, %p95
      %p97 = scmp.ne.s32.totalorder %s86, %s89
      %p98 = scmp.eq.s32.totalorder %s17, 1
      %p99 = por %p97, %p98
      %p100 = scmp.ne.s32.totalorder %s89, %s90
      %p101 = scmp.eq.s32.totalorder %s17, 0
      %p102 = por %p100, %p101
      %p103 = scmp.ne.s32.totalorder %s89, %s90
      %p104 = scmp.eq.s32.totalorder %s18, 1
      %p105 = por %p103, %p104
      %p107 = scmp.ne.s32.totalorder %s90, %s106
      %p108 = scmp.eq.s32.totalorder %s18, 0
      %p109 = por %p107, %p108
      %s110 = ssub.s32 %s20, %s27
      %s111 = ssub.s32 %s19, %s31
      %s112 = sor.u32 %s110, %s111
      %p113 = scmp.eq.s32.totalorder %s112, 0
      %s115 = sadd.s32 %s114, 1
      %s116 = scalar_select %p113, %s114, %s115
      %p119 = pneg %p113
      %p120 = scmp.eq.s32.totalorder %s12, 1
      %p121 = por %p119, %p120
      %p122 = scmp.ne.s32.totalorder %s114, %s117
      %p123 = scmp.eq.s32.totalorder %s12, 0
      %p124 = por %p122, %p123
      %p125 = scmp.ne.s32.totalorder %s114, %s117
      %p126 = scmp.eq.s32.totalorder %s17, 1
      %p127 = por %p125, %p126
      %p128 = scmp.ne.s32.totalorder %s117, %s118
      %p129 = scmp.eq.s32.totalorder %s17, 0
      %p130 = por %p128, %p129
      %p131 = scmp.ne.s32.totalorder %s117, %s118
      %p132 = scmp.eq.s32.totalorder %s18, 1
      %p133 = por %p131, %p132
      %p135 = scmp.ne.s32.totalorder %s118, %s134
      %p136 = scmp.eq.s32.totalorder %s18, 0
      %p137 = por %p135, %p136
      %p138 = scmp.le.s32.totalorder 1, %s12
      %p139 = scmp.lt.s32.totalorder %s12, 3
      %p140 = pnand %p138, %p139
      %p141 = pneg %p140
      // Predicated region
      $region9: #{dec_diff_k.1} parent=5 // pred_check
        _
      $region10: #{dec_diff_k.1} parent=5 // pred_check_branch
        %143 = sbr.rel (%p140) target = $region12
      $region11: #{dec_diff_k.1} parent=5 // pred_region
        %s144 = ssub.s32 %s12, 1
        // Predicated region
        $region13: #{dec_diff_k.1} parent=11 // pred_check
          %p145 = pneg %p102
        $region14: #{dec_diff_k.1} parent=11 // pred_check_branch
          %147 = sbr.rel (%p145) target = $region16
        $region15: #{dec_diff_k.1} parent=11 // pred_region
          %p148 = scmp.lt.s32.totalorder %s21, 0
          %s149 = scalar_select %p148, %s21, 0
          %s150 = smul.addr %s149, 4
          %s151 = scalar_lea.vmem %s2, %s150
        $region16: #{dec_diff_k.1} parent=11 // pred_fallthru
          _
      $region12: #{dec_diff_k.1} parent=5 // pred_fallthru
        _
      %p152 = scmp.lt.s32.totalorder %s12, 2
      // Predicated region
      $region17: #{dec_diff_k.1} parent=5 // pred_check
        %p153 = pneg %p152
      $region18: #{dec_diff_k.1} parent=5 // pred_check_branch
        %155 = sbr.rel (%p153) target = $region20
      $region19: #{dec_diff_k.1} parent=5 // pred_region
        // Predicated region
        $region21: #{dec_diff_k.1} parent=19 // pred_check
          %p156 = pneg %p44
        $region22: #{dec_diff_k.1} parent=19 // pred_check_branch
          %158 = sbr.rel (%p156) target = $region24
        $region23: #{dec_diff_k.1} parent=19 // pred_region
          %s159 = sand.u32 %s34, 1
          %s160 = scalar_lea.sflag [#allocation3], %s159
          %s161 = sand.u32 %s34, 1
          %s162 = smul.addr %s161, 16
          %s163 = scalar_lea.vmem [#allocation2], %s162
          %s164 = smul.u32 2, %s20
          %s166 = ssub.s32 256, 256
          %167 = vsyncadd %s160, %s166
          %s168 = smul.addr %s164, 128
          %s169 = scalar_lea.hbm %s0, %s168
          %s170 = sshll.u32 %s163, 4
          %s171 = int_to_ptr.vmem [resolvable:$true] %s170
          %176 = dma.hbm_to_vmem [thread:$0]  %s169, 256, %s171, %s160, 128, 128, 8
        $region24: #{dec_diff_k.1} parent=19 // pred_fallthru
          _
        // Predicated region
        $region25: #{dec_diff_k.1} parent=19 // pred_check
          %p177 = pneg %p70
        $region26: #{dec_diff_k.1} parent=19 // pred_check_branch
          %179 = sbr.rel (%p177) target = $region28
        $region27: #{dec_diff_k.1} parent=19 // pred_region
          %s180 = smul.u32 2, %s20
          %p181 = scmp.lt.s32.totalorder %s180, 3
          %s182 = scalar_select %p181, %s180, 3
          %s183 = smul.addr %s182, 4
          %s184 = scalar_lea.vmem %s1, %s183
          %s185 = smul.u32 2, %s20
        $region28: #{dec_diff_k.1} parent=19 // pred_fallthru
          _
      $region20: #{dec_diff_k.1} parent=5 // pred_fallthru
        _
      %p186 = scmp.le.s32.totalorder 1, %s12
      %p187 = scmp.lt.s32.totalorder %s12, 3
      %p188 = pnand %p186, %p187
      %p189 = pneg %p188
      // Predicated region
      $region29: #{dec_diff_k.1} parent=5 // pred_check
        _
      $region30: #{dec_diff_k.1} parent=5 // pred_check_branch
        %191 = sbr.rel (%p188) target = $region32
      $region31: #{dec_diff_k.1} parent=5 // pred_region
        %s192 = ssub.s32 %s12, 1
        %s193 = sand.u32 %s37, 1
        %s194 = scalar_lea.sflag [#allocation3], %s193
        %s195 = sand.u32 %s37, 1
        %s196 = smul.addr %s195, 16
        %s197 = scalar_lea.vmem [#allocation2], %s196
        // Predicated region
        $region33: #{dec_diff_k.1} parent=31 // pred_check
          %p198 = pneg %p50
        $region34: #{dec_diff_k.1} parent=31 // pred_check_branch
          %200 = sbr.rel (%p198) target = $region36
        $region35: #{dec_diff_k.1} parent=31 // pred_region
          %201 = dma.done %s194, 256
        $region36: #{dec_diff_k.1} parent=31 // pred_fallthru
          _
        %s202 = sand.u32 %s37, 1
        %s203 = scalar_lea.sflag [#allocation3], %s202
        %s204 = sand.u32 %s37, 1
        %s205 = smul.addr %s204, 16
        %s206 = scalar_lea.vmem [#allocation2], %s205
        %p207 = pneg %p50
        %p208 = pneg %p47
        %s209 = smul.u32 2, %s22
        %p210 = scmp.lt.s32.totalorder %s209, 3
        %s211 = scalar_select %p210, %s209, 3
        %s212 = smul.addr %s211, 4
        %s213 = scalar_lea.vmem %s1, %s212
        %p214 = pneg %p76
        %p215 = pneg %p73
        %p216 = scmp.lt.s32.totalorder %s21, 0
        %s217 = scalar_select %p216, %s21, 0
        %s218 = smul.addr %s217, 4
        %s219 = scalar_lea.vmem %s2, %s218
        %p220 = pneg %p102
        %p221 = pneg %p99
        %p222 = pneg %p130
        %p223 = pneg %p127
        %s224 = smul.u32 2, %s22
        %p225 = scmp.lt.s32.totalorder %s224, 3
        %s226 = scalar_select %p225, %s224, 3
        %p227 = scmp.lt.s32.totalorder %s21, 0
        %s228 = scalar_select %p227, %s21, 0
        %s229 = sadd.s32 %s228, %s226
        %s230 = smul.addr %s229, 8
        %s231 = scalar_lea.vmem %s3, %s230
        %s232 = smul.u32 2, %s22
        %s233 = smul.u32 2, %s22
        %p234 = scmp.lt.s32.totalorder %s233, 3
        %s235 = scalar_select %p234, %s233, 3
        %s236 = smul.addr %s235, 4
        %s237 = scalar_lea.vmem %s1, %s236
        %s238 = smul.u32 2, %s22
        %p239 = scmp.lt.s32.totalorder %s21, 0
        %s240 = scalar_select %p239, %s21, 0
        %s241 = smul.addr %s240, 4
        %s242 = scalar_lea.vmem %s2, %s241
        %s243 = smul.u32 2, %s22
        %p244 = scmp.lt.s32.totalorder %s243, 3
        %s245 = scalar_select %p244, %s243, 3
        %p246 = scmp.lt.s32.totalorder %s21, 0
        %s247 = scalar_select %p246, %s21, 0
        %s248 = sadd.s32 %s247, %s245
        %s249 = smul.addr %s248, 8
        %s250 = scalar_lea.vmem %s3, %s249
        %s251 = smul.u32 2, %s22
        %v253 = vld [vmem:[%s237] sm:$0xf]
        %v254 = vld [vmem:[%s237 + $0x4] sm:$0xf]
        %v255 = vld [vmem:[%s197] sm:$0xff]
        %v256 = vld [vmem:[%s197 + $0x8] sm:$0xff]
        %vm257 = vcmp.eq.s32.totalorder %v255, 0
        %vm258 = vcmp.eq.s32.totalorder %v256, 0
        %v259 = vsel %vm257, 1, 0
        %v260 = vsel %vm258, 1, 0
        %261 = vset.pattern.permute.xlu0 0
        %262 = vperm.xlu0 %261, %v259
        %v263 = vpop.permute.xlu0 %262
        %264 = vset.pattern.permute.xlu0 0
        %265 = vperm.xlu0 %264, %v260
        %v266 = vpop.permute.xlu0 %265
        %vm267 = vcmp.eq.s32.totalorder %v263, 1
        %vm268 = vcmp.eq.s32.totalorder %v266, 1
        %vm269 = vmpackc.low %vm267, %vm267
        %vm270 = vmpackc.low %vm268, %vm268
        %v271 = vsel %vm269, %v253, 0
        %v272 = vsel %vm270, %v254, 0
        %v273 = vld [vmem:[%s242] sm:$0xf]
        %v274 = vld [vmem:[%s242 + $0x4] sm:$0xf]
        %v275 = vld [vmem:[%s242 + $0x8] sm:$0xf]
        %v276 = vld [vmem:[%s242 + $0xc] sm:$0xf]
        %vm277 = vcmp.eq.s32.totalorder %v255, 1
        %vm278 = vcmp.eq.s32.totalorder %v256, 1
        %v279 = vsel %vm277, 1, 0
        %v280 = vsel %vm278, 1, 0
        %281 = vset.pattern.permute.xlu0 0
        %282 = vperm.xlu0 %281, %v279
        %v283 = vpop.permute.xlu0 %282
        %284 = vset.pattern.permute.xlu0 0
        %285 = vperm.xlu0 %284, %v280
        %v286 = vpop.permute.xlu0 %285
        %vm287 = vcmp.eq.s32.totalorder %v283, 1
        %vm288 = vcmp.eq.s32.totalorder %v286, 1
        %vm289 = vmpackc.low %vm287, %vm287
        %vm290 = vmpackc.low %vm288, %vm288
        %v291 = vsel %vm289, %v253, 0
        %v292 = vsel %vm290, %v254, 0
        %s293 = scalar_lea.vmem %s242, 16
        %v294 = vld [vmem:[%s293] sm:$0xf]
        %v295 = vld [vmem:[%s293 + $0x4] sm:$0xf]
        %v296 = vld [vmem:[%s293 + $0x8] sm:$0xf]
        %v297 = vld [vmem:[%s293 + $0xc] sm:$0xf]
        %v300 = vunpack.c.l.b16 %v291
        %v301 = vunpack.c.l.b16 %v292
        %v302 = vpack.c.b16 %v301, %v300
        %v307 = vunpack.c.l.b16 %v294
        %v308 = vunpack.c.l.b16 %v295
        %v309 = vunpack.c.l.b16 %v296
        %v310 = vunpack.c.l.b16 %v297
        %v311 = vpack.c.b16 %v308, %v307
        %v312 = vpack.c.b16 %v310, %v309
        %vm315 = vcmask 261120
        %v317 = vsel %vm315, %v302, 0
        %319 = vmatprep.subr.bf16.mxu0 0
        %320 = vmatpush1.bf16.msra.mxu0 0
        %321 = vmatprep.subr.bf16.mxu0 0
        %322 = vmatpush1.bf16.msra.mxu0 0
        %323 = vmatprep.subr.bf16.mxu0 0
        %324 = vmatpush1.bf16.msra.mxu0 0
        %325 = vmatprep.subr.bf16.mxu0 0
        %326 = vmatpush1.bf16.msra.mxu0 0
        %327 = vmatprep.subr.bf16.mxu0 0
        %328 = vmatpush1.bf16.msra.mxu0 0
        %329 = vmatprep.subr.bf16.mxu0 0
        %330 = vmatpush1.bf16.msra.mxu0 0
        %331 = vmatprep.subr.bf16.mxu0 0
        %332 = vmatpush1.bf16.msra.mxu0 %v312
        %333 = vmatprep.subr.bf16.mxu0 0
        %334 = vmatpush1.bf16.msra.mxu0 %v311
        %335 = vmatprep.subr.bf16.mxu0 0
        %336 = vmatpush2.bf16.msra.mxu0 0
        %337 = vmatprep.subr.bf16.mxu0 0
        %338 = vmatpush2.bf16.msra.mxu0 0
        %339 = vmatprep.subr.bf16.mxu0 0
        %340 = vmatpush2.bf16.msra.mxu0 0
        %341 = vmatprep.subr.bf16.mxu0 0
        %342 = vmatpush2.bf16.msra.mxu0 0
        %343 = vmatprep.subr.bf16.mxu0 0
        %344 = vmatpush2.bf16.msra.mxu0 0
        %345 = vmatprep.subr.bf16.mxu0 0
        %346 = vmatpush2.bf16.msra.mxu0 0
        %347 = vmatprep.subr.bf16.mxu0 0
        %348 = vmatpush2.bf16.msra.mxu0 0
        %349 = vmatprep.subr.bf16.mxu0 0
        %350 = vmatpush2.bf16.msra.mxu0 0
        %351 = vmatprep.mubr.bf16.mxu0 0
        %352 = vmatmul.mubr.bf16.gmra.mxu0 %v317
        %v353 = vpop.f32.mrf.mxu0
        %v354 = vadd.f32 0.0, %v353
        %v355 = vpop.f32.mrf.mxu0
        %v356 = vpop.f32.mrf.mxu0
        %v357 = vadd.f32 0.0, %v356
        %v358 = vpop.f32.mrf.mxu0
        %359 = vdwg.mxu0
        %v362 = vunpack.c.l.b16 %v271
        %v363 = vunpack.c.l.b16 %v272
        %v364 = vpack.c.b16 %v363, %v362
        %v369 = vunpack.c.l.b16 %v273
        %v370 = vunpack.c.l.b16 %v274
        %v371 = vunpack.c.l.b16 %v275
        %v372 = vunpack.c.l.b16 %v276
        %v373 = vpack.c.b16 %v370, %v369
        %v374 = vpack.c.b16 %v372, %v371
        %v378 = vsel %vm315, %v364, 0
        %380 = vmatprep.subr.bf16.mxu0 0
        %381 = vmatpush1.bf16.msra.mxu0 0
        %382 = vmatprep.subr.bf16.mxu0 0
        %383 = vmatpush1.bf16.msra.mxu0 0
        %384 = vmatprep.subr.bf16.mxu0 0
        %385 = vmatpush1.bf16.msra.mxu0 0
        %386 = vmatprep.subr.bf16.mxu0 0
        %387 = vmatpush1.bf16.msra.mxu0 0
        %388 = vmatprep.subr.bf16.mxu0 0
        %389 = vmatpush1.bf16.msra.mxu0 0
        %390 = vmatprep.subr.bf16.mxu0 0
        %391 = vmatpush1.bf16.msra.mxu0 0
        %392 = vmatprep.subr.bf16.mxu0 0
        %393 = vmatpush1.bf16.msra.mxu0 %v374
        %394 = vmatprep.subr.bf16.mxu0 0
        %395 = vmatpush1.bf16.msra.mxu0 %v373
        %396 = vmatprep.subr.bf16.mxu0 0
        %397 = vmatpush2.bf16.msra.mxu0 0
        %398 = vmatprep.subr.bf16.mxu0 0
        %399 = vmatpush2.bf16.msra.mxu0 0
        %400 = vmatprep.subr.bf16.mxu0 0
        %401 = vmatpush2.bf16.msra.mxu0 0
        %402 = vmatprep.subr.bf16.mxu0 0
        %403 = vmatpush2.bf16.msra.mxu0 0
        %404 = vmatprep.subr.bf16.mxu0 0
        %405 = vmatpush2.bf16.msra.mxu0 0
        %406 = vmatprep.subr.bf16.mxu0 0
        %407 = vmatpush2.bf16.msra.mxu0 0
        %408 = vmatprep.subr.bf16.mxu0 0
        %409 = vmatpush2.bf16.msra.mxu0 0
        %410 = vmatprep.subr.bf16.mxu0 0
        %411 = vmatpush2.bf16.msra.mxu0 0
        %412 = vmatprep.mubr.bf16.mxu0 0
        %413 = vmatmul.mubr.bf16.gmra.mxu0 %v378
        %v414 = vpop.f32.mrf.mxu0
        %v415 = vadd.f32 %v354, %v414
        %v416 = vpop.f32.mrf.mxu0
        %v417 = vpop.f32.mrf.mxu0
        %v418 = vadd.f32 %v357, %v417
        %v419 = vpop.f32.mrf.mxu0
        %420 = vdwg.mxu0
        %vm421 = vcmp.eq.s32.totalorder %v255, 2
        %vm422 = vcmp.eq.s32.totalorder %v256, 2
        %v423 = vsel %vm421, 1, 0
        %v424 = vsel %vm422, 1, 0
        %425 = vset.pattern.permute.xlu0 0
        %426 = vperm.xlu0 %425, %v423
        %v427 = vpop.permute.xlu0 %426
        %428 = vset.pattern.permute.xlu0 0
        %429 = vperm.xlu0 %428, %v424
        %v430 = vpop.permute.xlu0 %429
        %vm431 = vcmp.eq.s32.totalorder %v427, 1
        %vm432 = vcmp.eq.s32.totalorder %v430, 1
        %vm433 = vmpackc.low %vm431, %vm431
        %vm434 = vmpackc.low %vm432, %vm432
        %v435 = vsel %vm433, %v253, 0
        %v436 = vsel %vm434, %v254, 0
        %s437 = scalar_lea.vmem %s242, 32
        %v438 = vld [vmem:[%s437] sm:$0xf]
        %v439 = vld [vmem:[%s437 + $0x4] sm:$0xf]
        %v440 = vld [vmem:[%s437 + $0x8] sm:$0xf]
        %v441 = vld [vmem:[%s437 + $0xc] sm:$0xf]
        %v444 = vunpack.c.l.b16 %v435
        %v445 = vunpack.c.l.b16 %v436
        %v446 = vpack.c.b16 %v445, %v444
        %v451 = vunpack.c.l.b16 %v438
        %v452 = vunpack.c.l.b16 %v439
        %v453 = vunpack.c.l.b16 %v440
        %v454 = vunpack.c.l.b16 %v441
        %v455 = vpack.c.b16 %v452, %v451
        %v456 = vpack.c.b16 %v454, %v453
        %v460 = vsel %vm315, %v446, 0
        %462 = vmatprep.subr.bf16.mxu0 0
        %463 = vmatpush1.bf16.msra.mxu0 0
        %464 = vmatprep.subr.bf16.mxu0 0
        %465 = vmatpush1.bf16.msra.mxu0 0
        %466 = vmatprep.subr.bf16.mxu0 0
        %467 = vmatpush1.bf16.msra.mxu0 0
        %468 = vmatprep.subr.bf16.mxu0 0
        %469 = vmatpush1.bf16.msra.mxu0 0
        %470 = vmatprep.subr.bf16.mxu0 0
        %471 = vmatpush1.bf16.msra.mxu0 0
        %472 = vmatprep.subr.bf16.mxu0 0
        %473 = vmatpush1.bf16.msra.mxu0 0
        %474 = vmatprep.subr.bf16.mxu0 0
        %475 = vmatpush1.bf16.msra.mxu0 %v456
        %476 = vmatprep.subr.bf16.mxu0 0
        %477 = vmatpush1.bf16.msra.mxu0 %v455
        %478 = vmatprep.subr.bf16.mxu0 0
        %479 = vmatpush2.bf16.msra.mxu0 0
        %480 = vmatprep.subr.bf16.mxu0 0
        %481 = vmatpush2.bf16.msra.mxu0 0
        %482 = vmatprep.subr.bf16.mxu0 0
        %483 = vmatpush2.bf16.msra.mxu0 0
        %484 = vmatprep.subr.bf16.mxu0 0
        %485 = vmatpush2.bf16.msra.mxu0 0
        %486 = vmatprep.subr.bf16.mxu0 0
        %487 = vmatpush2.bf16.msra.mxu0 0
        %488 = vmatprep.subr.bf16.mxu0 0
        %489 = vmatpush2.bf16.msra.mxu0 0
        %490 = vmatprep.subr.bf16.mxu0 0
        %491 = vmatpush2.bf16.msra.mxu0 0
        %492 = vmatprep.subr.bf16.mxu0 0
        %493 = vmatpush2.bf16.msra.mxu0 0
        %494 = vmatprep.mubr.bf16.mxu0 0
        %495 = vmatmul.mubr.bf16.gmra.mxu0 %v460
        %v496 = vpop.f32.mrf.mxu0
        %v497 = vadd.f32 0.0, %v496
        %v498 = vpop.f32.mrf.mxu0
        %v499 = vpop.f32.mrf.mxu0
        %v500 = vadd.f32 0.0, %v499
        %v501 = vpop.f32.mrf.mxu0
        %502 = vdwg.mxu0
        %v503 = vadd.f32 %v415, %v497
        %v504 = vadd.f32 %v418, %v500
        %505 = vst [vmem:[%s250] sm:$0xff] %v503
        %506 = vst [vmem:[%s250 + $0x8] sm:$0xff] %v504
        %s507 = smul.u32 2, %s22
        %p508 = scmp.lt.s32.totalorder %s507, 3
        %s509 = scalar_select %p508, %s507, 3
        %p510 = scmp.lt.s32.totalorder %s21, 0
        %s511 = scalar_select %p510, %s21, 0
        %s512 = sadd.s32 %s511, %s509
        %s513 = smul.addr %s512, 8
        %s514 = scalar_lea.vmem %s3, %s513
        // Predicated region
        $region37: #{dec_diff_k.1} parent=31 // pred_check
          %p515 = pneg %p127
        $region38: #{dec_diff_k.1} parent=31 // pred_check_branch
          %517 = sbr.rel (%p515) target = $region40
        $region39: #{dec_diff_k.1} parent=31 // pred_region
          %s518 = smul.u32 2, %s22
        $region40: #{dec_diff_k.1} parent=31 // pred_fallthru
          _
      $region32: #{dec_diff_k.1} parent=5 // pred_fallthru
        _
      %p519 = scmp.le.s32.totalorder 2, %s12
      // Predicated region
      $region41: #{dec_diff_k.1} parent=5 // pred_check
        %p520 = pneg %p519
      $region42: #{dec_diff_k.1} parent=5 // pred_check_branch
        %522 = sbr.rel (%p520) target = $region44
      $region43: #{dec_diff_k.1} parent=5 // pred_region
        %s523 = ssub.s32 %s12, 2
        // Predicated region
        $region45: #{dec_diff_k.1} parent=43 // pred_check
          %p524 = pneg %p133
        $region46: #{dec_diff_k.1} parent=43 // pred_check_branch
          %526 = sbr.rel (%p524) target = $region48
        $region47: #{dec_diff_k.1} parent=43 // pred_region
          %s527 = smul.u32 2, %s24
          %p528 = scmp.lt.s32.totalorder %s527, 3
          %s529 = scalar_select %p528, %s527, 3
          %p530 = scmp.lt.s32.totalorder %s23, 0
          %s531 = scalar_select %p530, %s23, 0
          %s532 = sadd.s32 %s531, %s529
          %s533 = smul.addr %s532, 8
          %s534 = scalar_lea.vmem %s3, %s533
        $region48: #{dec_diff_k.1} parent=43 // pred_fallthru
          _
      $region44: #{dec_diff_k.1} parent=5 // pred_fallthru
        _
    $region6: #{dec_diff_k.1} parent=1 // loop_footer
      %s16 = sadd.s32 1, %s12
    $region7: #{dec_diff_k.1} parent=1 // loop_footer_branch
      %11 = sbr.rel target = $region3
    $region8: #{dec_diff_k.1} parent=1 // loop_exit
      _
    %535 = vsyncpa [#allocation3], 1
    %s536 = scalar_lea.sflag [#allocation3], 1
    %537 = vsyncpa %s536, 1

</llo_original>
